<compile_context>
chip_gen: v5e
topology: v5e:2x2
jax: 0.10.0
libtpu: 0.0.40
codegen_flags: <defaults>
</compile_context>

<pallas_src>
import functools

import jax
import jax.numpy as jnp
from jax.experimental import pallas as pl
from jax.experimental.pallas import tpu as pltpu

LANE = 128          # lane width: hidden/out feature dims padded to this
SUBLANE_BF16 = 16   # bf16 sublane packing: batch / contraction dims padded to this
DEFAULT_TB = 512    # batch tile: 512x128 f32 = 256 KiB per buffer -> safe on v5e/v6e/v7x


def _round_up(n, m):
    return ((n + m - 1) // m) * m


def _fused_mlp_kernel(x_ref, w0_ref, wrest_ref, b_ref, o_ref, *, depth: int):
    """One batch tile of the whole MLP.

    x_ref:     (TB, in_pad)           f32 activations (K not padded to 128)
    w0_ref:    (in_pad, LANE)         bf16 layer-0 weight
    wrest_ref: (depth-1, LANE, LANE)  bf16 weights for layers 1..depth-1
    b_ref:     (depth, 1, LANE)       f32 biases (row broadcasts over batch)
    o_ref:     (TB, LANE)             f32 lane-dense output
    """
    # Layer 0: bf16 MXU inputs, explicit f32 accumulation.
    h = jnp.dot(x_ref[...].astype(jnp.bfloat16), w0_ref[...],
                preferred_element_type=jnp.float32) + b_ref[0]
    h = jnp.maximum(h, 0.0)
    # Static unroll is fine at depth=4; use lax.fori_loop for depth >> 8.
    for i in range(depth - 1):
        h = jnp.dot(h.astype(jnp.bfloat16), wrest_ref[i],
                    preferred_element_type=jnp.float32) + b_ref[i + 1]
        if i != depth - 2:
            h = jnp.maximum(h, 0.0)   # ReLU between hidden layers only
    o_ref[...] = h.astype(o_ref.dtype)


def fused_mlp_pallas(x_pad, w0, w_rest, b_stack, tb):
    """Whole padded MLP in one Pallas kernel. Returns (B_pad, LANE) f32."""
    b_pad, in_pad = x_pad.shape
    depth = b_stack.shape[0]
    lane = b_stack.shape[-1]
    kernel = functools.partial(_fused_mlp_kernel, depth=depth)
    grid = (pl.cdiv(b_pad, tb),)
    return pl.pallas_call(
        kernel,
        out_shape=jax.ShapeDtypeStruct((b_pad, lane), jnp.float32),
        grid=grid,
        in_specs=[
            # Activations stream per batch tile.
            pl.BlockSpec((tb, in_pad), lambda i: (i, 0)),
            # Weights/biases: full-extent blocks with constant index_map ->
            # DMA'd once, VMEM-resident across all batch tiles.
            pl.BlockSpec((in_pad, lane), lambda i: (0, 0)),
            pl.BlockSpec((depth - 1, lane, lane), lambda i: (0, 0, 0)),
            pl.BlockSpec((depth, 1, lane), lambda i: (0, 0, 0)),
        ],
        out_specs=pl.BlockSpec((tb, lane), lambda i: (i, 0)),
        compiler_params=pltpu.CompilerParams(
            dimension_semantics=("parallel",),
            # Footprint: 2x double-buffered (TB,128) f32 tiles + ~100 KiB of
            # bf16 weights — comfortably under the default scoped VMEM on
            # every generation (incl. v7x's 64 MiB physical).
            vmem_limit_bytes=32 * 1024 * 1024,
        ),
    )(x_pad, w0, w_rest, b_stack)


def init_deepnn_params(key, in_dim, hidden, depth, out_dim=2):
    """Deterministic init mimicking nn.Linear default U(-1/sqrt(fan_in), +)."""
    dims = [in_dim] + [hidden] * (depth - 1) + [out_dim]
    params = []
    for i in range(len(dims) - 1):
        fan_in, fan_out = dims[i], dims[i + 1]
        key, kw, kb = jax.random.split(key, 3)
        bound = 1.0 / jnp.sqrt(jnp.float32(fan_in))
        # Stored as (fan_in, fan_out) so forward is x @ W (== torch x @ W^T).
        w = jax.random.uniform(kw, (fan_in, fan_out), jnp.float32, -bound, bound)
        b = jax.random.uniform(kb, (fan_out,), jnp.float32, -bound, bound)
        params.append((w, b))
    return params


def pack_params(params, lane=LANE):
    """Zero-pad weights/biases and cast weights to bf16. Done ONCE.

    Returns:
      w0:      (in_pad, lane)          bf16   layer-0 weight (K not lane-padded)
      w_rest:  (depth-1, lane, lane)   bf16   remaining weights
      b_stack: (depth, 1, lane)        f32    biases
    """
    assert len(params) >= 2
    w0, b0 = params[0]
    in_dim, fout0 = w0.shape
    in_pad = _round_up(in_dim, SUBLANE_BF16)
    w0_pad = jnp.pad(w0, ((0, in_pad - in_dim), (0, lane - fout0))).astype(jnp.bfloat16)

    w_rest, b_list = [], [jnp.pad(b0, (0, lane - b0.shape[0]))[None, :]]
    for w, b in params[1:]:
        fin, fout = w.shape
        w_rest.append(jnp.pad(w, ((0, lane - fin), (0, lane - fout))).astype(jnp.bfloat16))
        b_list.append(jnp.pad(b, (0, lane - fout))[None, :])
    return w0_pad, jnp.stack(w_rest), jnp.stack(b_list).astype(jnp.float32)


def deepnn_forward(x, w0, w_rest, b_stack, out_dim, tb=DEFAULT_TB):
    batch, in_dim = x.shape
    in_pad = w0.shape[0]
    tb = min(tb, _round_up(batch, SUBLANE_BF16))
    b_pad = _round_up(batch, tb)
    x_pad = jnp.pad(x, ((0, b_pad - batch), (0, in_pad - in_dim)))  # no scatter
    y_pad = fused_mlp_pallas(x_pad, w0, w_rest, b_stack, tb)        # (B_pad, 128)
    return y_pad[:batch, :out_dim]                                  # un-pad outside


if __name__ == "__main__":
    # Shapes consistent with the module: DeepNN(in_dim=32, hidden=32, depth=4, out_dim=2)
    batch, in_dim, hidden, depth, out_dim = 8, 32, 32, 4, 2

    key = jax.random.PRNGKey(0)
    kx, kp = jax.random.split(key)
    x = jax.random.normal(kx, (batch, in_dim), jnp.float32)
    params = init_deepnn_params(kp, in_dim, hidden, depth, out_dim)
    w0, w_rest, b_stack = pack_params(params)

    out = deepnn_forward(x, w0, w_rest, b_stack, out_dim)
    out = jax.block_until_ready(out)

    # Pure-JAX f32 reference (unpadded params). bf16 MXU inputs -> loosened tol.
    ref = x
    for i, (w, b) in enumerate(params):
        ref = ref @ w + b
        if i != len(params) - 1:
            ref = jnp.maximum(ref, 0.0)

    assert out.shape == (batch, out_dim)
    assert jnp.allclose(out, ref, atol=5e-2, rtol=5e-2)

    print("KERNEL_OK")
</pallas_src>

<mosaic_0001>
module attributes {stable_mosaic.version = 11 : i64} {
  func.func @_fused_mlp_kernel(%arg0: i32, %arg1: memref<16x32xf32, #tpu.memory_space<vmem>>, %arg2: memref<32x128xbf16, #tpu.memory_space<vmem>>, %arg3: memref<3x128x128xbf16, #tpu.memory_space<vmem>>, %arg4: memref<4x1x128xf32, #tpu.memory_space<vmem>>, %arg5: memref<16x128xf32, #tpu.memory_space<vmem>>) attributes {dimension_semantics = [#tpu.dimension_semantics<parallel>], iteration_bounds = array<i64: 1>, scalar_prefetch = 0 : i64, scratch_operands = 0 : i64, tpu.core_type = #tpu.core_type<tc>, window_params = [{transform_indices = @transform_0, window_bounds = array<i64: 16, 32>}, {pipeline_mode = #tpu.pipeline_mode<synchronous>, transform_indices = @transform_1, window_bounds = array<i64: 32, 128>}, {pipeline_mode = #tpu.pipeline_mode<synchronous>, transform_indices = @transform_2, window_bounds = array<i64: 3, 128, 128>}, {pipeline_mode = #tpu.pipeline_mode<synchronous>, transform_indices = @transform_3, window_bounds = array<i64: 4, 1, 128>}, {transform_indices = @transform_4, window_bounds = array<i64: 16, 128>}]} {
    %c0 = arith.constant 0 : index
    %c0_0 = arith.constant 0 : index
    %0 = vector.load %arg1[%c0, %c0_0] : memref<16x32xf32, #tpu.memory_space<vmem>>, vector<16x32xf32>
    %1 = arith.truncf %0 : vector<16x32xf32> to vector<16x32xbf16>
    %c0_1 = arith.constant 0 : index
    %c0_2 = arith.constant 0 : index
    %2 = vector.load %arg2[%c0_1, %c0_2] : memref<32x128xbf16, #tpu.memory_space<vmem>>, vector<32x128xbf16>
    %cst = arith.constant dense<0.000000e+00> : vector<16x128xf32>
    %3 = tpu.matmul %1, %2, %cst {dimension_numbers = #tpu.dot_dimension_numbers<[1], [0], [0], [1], [0, 0, 1, 1], [], []>} : vector<16x32xbf16>, vector<32x128xbf16>, vector<16x128xf32> -> vector<16x128xf32>
    %c0_3 = arith.constant 0 : index
    %c0_4 = arith.constant 0 : index
    %c0_5 = arith.constant 0 : index
    %4 = vector.load %arg4[%c0_3, %c0_4, %c0_5] : memref<4x1x128xf32, #tpu.memory_space<vmem>>, vector<1x1x128xf32>
    %5 = vector.shape_cast %4 : vector<1x1x128xf32> to vector<1x128xf32>
    %6 = vector.broadcast %5 : vector<1x128xf32> to vector<16x128xf32>
    %7 = arith.addf %3, %6 : vector<16x128xf32>
    %cst_6 = arith.constant 0.000000e+00 : f32
    %8 = vector.broadcast %cst_6 : f32 to vector<16x128xf32>
    %9 = arith.maximumf %7, %8 : vector<16x128xf32>
    %10 = arith.truncf %9 : vector<16x128xf32> to vector<16x128xbf16>
    %c0_7 = arith.constant 0 : index
    %c0_8 = arith.constant 0 : index
    %c0_9 = arith.constant 0 : index
    %11 = vector.load %arg3[%c0_7, %c0_8, %c0_9] : memref<3x128x128xbf16, #tpu.memory_space<vmem>>, vector<1x128x128xbf16>
    %12 = vector.shape_cast %11 : vector<1x128x128xbf16> to vector<128x128xbf16>
    %cst_10 = arith.constant dense<0.000000e+00> : vector<16x128xf32>
    %13 = tpu.matmul %10, %12, %cst_10 {dimension_numbers = #tpu.dot_dimension_numbers<[1], [0], [0], [1], [0, 0, 1, 1], [], []>} : vector<16x128xbf16>, vector<128x128xbf16>, vector<16x128xf32> -> vector<16x128xf32>
    %c1 = arith.constant 1 : index
    %c0_11 = arith.constant 0 : index
    %c0_12 = arith.constant 0 : index
    %14 = vector.load %arg4[%c1, %c0_11, %c0_12] : memref<4x1x128xf32, #tpu.memory_space<vmem>>, vector<1x1x128xf32>
    %15 = vector.shape_cast %14 : vector<1x1x128xf32> to vector<1x128xf32>
    %16 = vector.broadcast %15 : vector<1x128xf32> to vector<16x128xf32>
    %17 = arith.addf %13, %16 : vector<16x128xf32>
    %cst_13 = arith.constant 0.000000e+00 : f32
    %18 = vector.broadcast %cst_13 : f32 to vector<16x128xf32>
    %19 = arith.maximumf %17, %18 : vector<16x128xf32>
    %20 = arith.truncf %19 : vector<16x128xf32> to vector<16x128xbf16>
    %c1_14 = arith.constant 1 : index
    %c0_15 = arith.constant 0 : index
    %c0_16 = arith.constant 0 : index
    %21 = vector.load %arg3[%c1_14, %c0_15, %c0_16] : memref<3x128x128xbf16, #tpu.memory_space<vmem>>, vector<1x128x128xbf16>
    %22 = vector.shape_cast %21 : vector<1x128x128xbf16> to vector<128x128xbf16>
    %cst_17 = arith.constant dense<0.000000e+00> : vector<16x128xf32>
    %23 = tpu.matmul %20, %22, %cst_17 {dimension_numbers = #tpu.dot_dimension_numbers<[1], [0], [0], [1], [0, 0, 1, 1], [], []>} : vector<16x128xbf16>, vector<128x128xbf16>, vector<16x128xf32> -> vector<16x128xf32>
    %c2 = arith.constant 2 : index
    %c0_18 = arith.constant 0 : index
    %c0_19 = arith.constant 0 : index
    %24 = vector.load %arg4[%c2, %c0_18, %c0_19] : memref<4x1x128xf32, #tpu.memory_space<vmem>>, vector<1x1x128xf32>
    %25 = vector.shape_cast %24 : vector<1x1x128xf32> to vector<1x128xf32>
    %26 = vector.broadcast %25 : vector<1x128xf32> to vector<16x128xf32>
    %27 = arith.addf %23, %26 : vector<16x128xf32>
    %cst_20 = arith.constant 0.000000e+00 : f32
    %28 = vector.broadcast %cst_20 : f32 to vector<16x128xf32>
    %29 = arith.maximumf %27, %28 : vector<16x128xf32>
    %30 = arith.truncf %29 : vector<16x128xf32> to vector<16x128xbf16>
    %c2_21 = arith.constant 2 : index
    %c0_22 = arith.constant 0 : index
    %c0_23 = arith.constant 0 : index
    %31 = vector.load %arg3[%c2_21, %c0_22, %c0_23] : memref<3x128x128xbf16, #tpu.memory_space<vmem>>, vector<1x128x128xbf16>
    %32 = vector.shape_cast %31 : vector<1x128x128xbf16> to vector<128x128xbf16>
    %cst_24 = arith.constant dense<0.000000e+00> : vector<16x128xf32>
    %33 = tpu.matmul %30, %32, %cst_24 {dimension_numbers = #tpu.dot_dimension_numbers<[1], [0], [0], [1], [0, 0, 1, 1], [], []>} : vector<16x128xbf16>, vector<128x128xbf16>, vector<16x128xf32> -> vector<16x128xf32>
    %c3 = arith.constant 3 : index
    %c0_25 = arith.constant 0 : index
    %c0_26 = arith.constant 0 : index
    %34 = vector.load %arg4[%c3, %c0_25, %c0_26] : memref<4x1x128xf32, #tpu.memory_space<vmem>>, vector<1x1x128xf32>
    %35 = vector.shape_cast %34 : vector<1x1x128xf32> to vector<1x128xf32>
    %36 = vector.broadcast %35 : vector<1x128xf32> to vector<16x128xf32>
    %37 = arith.addf %33, %36 : vector<16x128xf32>
    %c0_27 = arith.constant 0 : index
    %c0_28 = arith.constant 0 : index
    %38 = vector.load %arg5[%c0_27, %c0_28] : memref<16x128xf32, #tpu.memory_space<vmem>>, vector<16x128xf32>
    tpu.vector_store %arg5[%c0_27, %c0_28], %37 {strides = array<i32>} : memref<16x128xf32, #tpu.memory_space<vmem>>, vector<16x128xf32>,
    return
  }
  func.func @transform_0(%arg0: i32) -> (i32, i32) {
    %c0_i32 = arith.constant 0 : i32
    %c0_i32_0 = arith.constant 0 : i32
    return %arg0, %c0_i32 : i32, i32
  }
  func.func @transform_1(%arg0: i32) -> (i32, i32) {
    %c0_i32 = arith.constant 0 : i32
    %c0_i32_0 = arith.constant 0 : i32
    %c0_i32_1 = arith.constant 0 : i32
    return %c0_i32, %c0_i32_0 : i32, i32
  }
  func.func @transform_2(%arg0: i32) -> (i32, i32, i32) {
    %c0_i32 = arith.constant 0 : i32
    %c0_i32_0 = arith.constant 0 : i32
    %c0_i32_1 = arith.constant 0 : i32
    %c0_i32_2 = arith.constant 0 : i32
    return %c0_i32, %c0_i32_0, %c0_i32_1 : i32, i32, i32
  }
  func.func @transform_3(%arg0: i32) -> (i32, i32, i32) {
    %c0_i32 = arith.constant 0 : i32
    %c0_i32_0 = arith.constant 0 : i32
    %c0_i32_1 = arith.constant 0 : i32
    %c0_i32_2 = arith.constant 0 : i32
    return %c0_i32, %c0_i32_0, %c0_i32_1 : i32, i32, i32
  }
  func.func @transform_4(%arg0: i32) -> (i32, i32) {
    %c0_i32 = arith.constant 0 : i32
    %c0_i32_0 = arith.constant 0 : i32
    return %arg0, %c0_i32 : i32, i32
  }
}

</mosaic_0001>

<llo_original>
// kernel: tpu_custom_call.1
$region0: #{tpu_custom_call.1}
  #allocation0 [shape = 'u32[]', space=smem, size = 0x4, offset = 0x4, fixed_abs, tag = 'smem constant byte address 0x4 - core index']
  #allocation1 [shape = 'u32[72,128]{1,0:T(1,128)}', space=vmem, size = 0x9000, scoped, tag = 'internal scratch']
  %s0 = inlined_call_operand.hbm [shape: f32[16,32], index: 0, kind: input, shape index: {}]
  %s1 = inlined_call_operand.hbm [shape: bf16[32,128], index: 1, kind: input, shape index: {}]
  %s2 = inlined_call_operand.hbm [shape: bf16[3,128,128], index: 2, kind: input, shape index: {}]
  %s3 = inlined_call_operand.hbm [shape: f32[4,1,128], index: 3, kind: input, shape index: {}]
  %s4 = inlined_call_operand.hbm [shape: f32[16,128], index: 4, kind: output, shape index: {}]
  %s5 = sld [smem:[#allocation0]]
  $region42: #{tpu_custom_call.1} parent=0
    _
  %s7 = ssub.s32 1, %s5
  %s8 = scalar_select 0, %s7, %s5
  $region1: #{tpu_custom_call.1} parent=0
    #allocation2 [shape = 'u8[8192]{0}', space=vmem, size = 0x2000, scoped, tag = 'input window, operand 0, single buffered']
    #allocation3 [shape = 's32[1]{0}', space=sflag, size = 0x4, scoped, tag = 'scoped memory for tpu_custom_call.1']
    #allocation4 [shape = 's32[1]{0}', space=sflag, size = 0x4, scoped, tag = 'scoped memory for tpu_custom_call.1']
    #allocation5 [shape = 'u8[8192]{0}', space=vmem, size = 0x2000, scoped, tag = 'input window, operand 1, single buffered']
    #allocation6 [shape = 's32[1]{0}', space=sflag, size = 0x4, scoped, tag = 'scoped memory for tpu_custom_call.1']
    #allocation7 [shape = 'u8[98304]{0}', space=vmem, size = 0x18000, scoped, tag = 'input window, operand 2, single buffered']
    #allocation8 [shape = 'u8[2048]{0}', space=vmem, size = 0x800, scoped, tag = 'input window, operand 3, single buffered']
    #allocation9 [shape = 's32[1]{0}', space=sflag, size = 0x4, scoped, tag = 'scoped memory for tpu_custom_call.1']
    #allocation10 [shape = 'u8[8192]{0}', space=vmem, size = 0x2000, scoped, tag = 'output window, operand 0, single buffered']
    %9 = vsyncpa [#allocation3], 0
    %10 = vsyncpa [#allocation6], 0
    %11 = vsyncpa [#allocation9], 0
    %12 = vsyncpa [#allocation4], 0
    // Predicated region
    $region2: #{tpu_custom_call.1} parent=1 // pred_check
      _
    $region3: #{tpu_custom_call.1} parent=1 // pred_check_branch
      %14 = sbr.rel (0) target = $region5
    $region4: #{tpu_custom_call.1} parent=1 // pred_region
      %16 = vsyncadd [#allocation3], 0
      %s17 = sshll.u32 %s0, 4
      %s18 = int_to_ptr.hbm [resolvable:$true] %s17
      %s19 = sshll.u32 [#allocation2], 4
      %s20 = int_to_ptr.vmem [resolvable:$true] %s19
      %25 = dma.hbm_to_vmem [thread:$0]  %s18, 256, %s20, [#allocation3], 128, 128, 8
    $region5: #{tpu_custom_call.1} parent=1 // pred_fallthru
      _
    // Predicated region
    $region6: #{tpu_custom_call.1} parent=1 // pred_check
      _
    $region7: #{tpu_custom_call.1} parent=1 // pred_check_branch
      %27 = sbr.rel (0) target = $region9
    $region8: #{tpu_custom_call.1} parent=1 // pred_region
      %29 = vsyncadd [#allocation6], 0
      %s30 = sshll.u32 %s1, 4
      %s31 = int_to_ptr.hbm [resolvable:$true] %s30
      %s32 = sshll.u32 [#allocation5], 4
      %s33 = int_to_ptr.vmem [resolvable:$true] %s32
      %38 = dma.hbm_to_vmem [thread:$0]  %s31, 256, %s33, [#allocation6], 64, 64, 4
    $region9: #{tpu_custom_call.1} parent=1 // pred_fallthru
      _
    // Predicated region
    $region10: #{tpu_custom_call.1} parent=1 // pred_check
      _
    $region11: #{tpu_custom_call.1} parent=1 // pred_check_branch
      %40 = sbr.rel (0) target = $region13
    $region12: #{tpu_custom_call.1} parent=1 // pred_region
      %42 = vsyncadd [#allocation6], 0
      %s43 = sshll.u32 %s2, 4
      %s44 = int_to_ptr.hbm [resolvable:$true] %s43
      %s45 = sshll.u32 [#allocation7], 4
      %s46 = int_to_ptr.vmem [resolvable:$true] %s45
      %51 = dma.hbm_to_vmem [thread:$0]  %s44, 3072, %s46, [#allocation6], 64, 64, 4
    $region13: #{tpu_custom_call.1} parent=1 // pred_fallthru
      _
    // Predicated region
    $region14: #{tpu_custom_call.1} parent=1 // pred_check
      _
    $region15: #{tpu_custom_call.1} parent=1 // pred_check_branch
      %53 = sbr.rel (0) target = $region17
    $region16: #{tpu_custom_call.1} parent=1 // pred_region
      %55 = vsyncadd [#allocation9], 0
      %s56 = sshll.u32 %s3, 4
      %s57 = int_to_ptr.hbm [resolvable:$true] %s56
      %s58 = sshll.u32 [#allocation8], 4
      %s59 = int_to_ptr.vmem [resolvable:$true] %s58
      %64 = dma.hbm_to_vmem [thread:$0]  %s57, 64, %s59, [#allocation9], 16, 16, 1
    $region17: #{tpu_custom_call.1} parent=1 // pred_fallthru
      _
    // Predicated region
    $region18: #{tpu_custom_call.1} parent=1 // pred_check
      _
    $region19: #{tpu_custom_call.1} parent=1 // pred_check_branch
      %66 = sbr.rel (0) target = $region21
    $region20: #{tpu_custom_call.1} parent=1 // pred_region
      %68 = dma.done [#allocation3], 256
    $region21: #{tpu_custom_call.1} parent=1 // pred_fallthru
      _
    // Predicated region
    $region22: #{tpu_custom_call.1} parent=1 // pred_check
      _
    $region23: #{tpu_custom_call.1} parent=1 // pred_check_branch
      %70 = sbr.rel (0) target = $region25
    $region24: #{tpu_custom_call.1} parent=1 // pred_region
      %72 = dma.done [#allocation6], 256
    $region25: #{tpu_custom_call.1} parent=1 // pred_fallthru
      _
    // Predicated region
    $region26: #{tpu_custom_call.1} parent=1 // pred_check
      _
    $region27: #{tpu_custom_call.1} parent=1 // pred_check_branch
      %74 = sbr.rel (0) target = $region29
    $region28: #{tpu_custom_call.1} parent=1 // pred_region
      %76 = dma.done [#allocation6], 3072
    $region29: #{tpu_custom_call.1} parent=1 // pred_fallthru
      _
    // Predicated region
    $region30: #{tpu_custom_call.1} parent=1 // pred_check
      _
    $region31: #{tpu_custom_call.1} parent=1 // pred_check_branch
      %78 = sbr.rel (0) target = $region33
    $region32: #{tpu_custom_call.1} parent=1 // pred_region
      %80 = dma.done [#allocation9], 64
    $region33: #{tpu_custom_call.1} parent=1 // pred_fallthru
      _
    %v82 = vld [vmem:[#allocation2] sm:$0xff]
    %v83 = vld [vmem:[#allocation2 + $0x8] sm:$0xff]
    %v84 = vpack.c.bf16 %v83, %v82
    %v85 = vld [vmem:[#allocation5] sm:$0xf]
    %v86 = vld [vmem:[#allocation5 + $0x4] sm:$0xf]
    %v87 = vld [vmem:[#allocation5 + $0x8] sm:$0xf]
    %v88 = vld [vmem:[#allocation5 + $0xc] sm:$0xf]
    %v89 = vld [vmem:[#allocation8] sm:$0x1]
    %v91 = vperm.slane %v89, 0
    %v97 = vunpack.c.l.b16 %v85
    %v98 = vunpack.c.l.b16 %v86
    %v99 = vunpack.c.l.b16 %v87
    %v100 = vunpack.c.l.b16 %v88
    %v101 = vpack.c.b16 %v98, %v97
    %v102 = vpack.c.b16 %v100, %v99
    %vm105 = vcmask 261120
    %v107 = vsel %vm105, %v84, 0
    %109 = vmatpush.bf16.msra.mxu0 0
    %110 = vmatpush.bf16.msra.mxu0 0
    %111 = vmatpush.bf16.msra.mxu0 0
    %112 = vmatpush.bf16.msra.mxu0 0
    %113 = vmatpush.bf16.msra.mxu0 0
    %114 = vmatpush.bf16.msra.mxu0 0
    %115 = vmatpush.bf16.msra.mxu0 %v102
    %116 = vmatpush.bf16.msra.mxu0 %v101
    %117 = vmatmul.bf16.gmra.mxu0 %v107
    %v118 = vpop.f32.mrf.mxu0
    %v119 = vadd.f32 %v91, %v118
    %v120 = vpop.f32.mrf.mxu0
    %v121 = vadd.f32 %v91, %v120
    %122 = vdwg.mxu0
    %v123 = vmax.f32 %v119, 0.0
    %v124 = vmax.f32 %v121, 0.0
    %v125 = vpack.c.bf16 %v124, %v123
    %v126 = vld [vmem:[#allocation7] sm:$0xf]
    %v127 = vld [vmem:[#allocation7 + $0x4] sm:$0xf]
    %v128 = vld [vmem:[#allocation7 + $0x8] sm:$0xf]
    %v129 = vld [vmem:[#allocation7 + $0xc] sm:$0xf]
    %v130 = vld [vmem:[#allocation7 + $0x10] sm:$0xf]
    %v131 = vld [vmem:[#allocation7 + $0x14] sm:$0xf]
    %v132 = vld [vmem:[#allocation7 + $0x18] sm:$0xf]
    %v133 = vld [vmem:[#allocation7 + $0x1c] sm:$0xf]
    %v134 = vld [vmem:[#allocation7 + $0x20] sm:$0xf]
    %v135 = vld [vmem:[#allocation7 + $0x24] sm:$0xf]
    %v136 = vld [vmem:[#allocation7 + $0x28] sm:$0xf]
    %v137 = vld [vmem:[#allocation7 + $0x2c] sm:$0xf]
    %v138 = vld [vmem:[#allocation7 + $0x30] sm:$0xf]
    %v139 = vld [vmem:[#allocation7 + $0x34] sm:$0xf]
    %v140 = vld [vmem:[#allocation7 + $0x38] sm:$0xf]
    %v141 = vld [vmem:[#allocation7 + $0x3c] sm:$0xf]
    %s142 = scalar_lea.vmem [#allocation8], 1
    %v143 = vld [vmem:[%s142] sm:$0x1]
    %v145 = vperm.slane %v143, 0
    %v163 = vunpack.c.l.b16 %v126
    %v164 = vunpack.c.l.b16 %v127
    %v165 = vunpack.c.l.b16 %v128
    %v166 = vunpack.c.l.b16 %v129
    %v167 = vunpack.c.l.b16 %v130
    %v168 = vunpack.c.l.b16 %v131
    %v169 = vunpack.c.l.b16 %v132
    %v170 = vunpack.c.l.b16 %v133
    %v171 = vunpack.c.l.b16 %v134
    %v172 = vunpack.c.l.b16 %v135
    %v173 = vunpack.c.l.b16 %v136
    %v174 = vunpack.c.l.b16 %v137
    %v175 = vunpack.c.l.b16 %v138
    %v176 = vunpack.c.l.b16 %v139
    %v177 = vunpack.c.l.b16 %v140
    %v178 = vunpack.c.l.b16 %v141
    %v179 = vpack.c.b16 %v164, %v163
    %v180 = vpack.c.b16 %v166, %v165
    %v181 = vpack.c.b16 %v168, %v167
    %v182 = vpack.c.b16 %v170, %v169
    %v183 = vpack.c.b16 %v172, %v171
    %v184 = vpack.c.b16 %v174, %v173
    %v185 = vpack.c.b16 %v176, %v175
    %v186 = vpack.c.b16 %v178, %v177
    %195 = vmatpush.bf16.msra.mxu0 %v186
    %196 = vmatpush.bf16.msra.mxu0 %v185
    %197 = vmatpush.bf16.msra.mxu0 %v184
    %198 = vmatpush.bf16.msra.mxu0 %v183
    %199 = vmatpush.bf16.msra.mxu0 %v182
    %200 = vmatpush.bf16.msra.mxu0 %v181
    %201 = vmatpush.bf16.msra.mxu0 %v180
    %202 = vmatpush.bf16.msra.mxu0 %v179
    %203 = vmatmul.bf16.gmra.mxu0 %v125
    %v204 = vpop.f32.mrf.mxu0
    %v205 = vadd.f32 %v145, %v204
    %v206 = vpop.f32.mrf.mxu0
    %v207 = vadd.f32 %v145, %v206
    %208 = vdwg.mxu0
    %v209 = vmax.f32 %v205, 0.0
    %v210 = vmax.f32 %v207, 0.0
    %v211 = vpack.c.bf16 %v210, %v209
    %s212 = scalar_lea.vmem [#allocation7], 64
    %v213 = vld [vmem:[%s212] sm:$0xf]
    %v214 = vld [vmem:[%s212 + $0x4] sm:$0xf]
    %v215 = vld [vmem:[%s212 + $0x8] sm:$0xf]
    %v216 = vld [vmem:[%s212 + $0xc] sm:$0xf]
    %v217 = vld [vmem:[%s212 + $0x10] sm:$0xf]
    %v218 = vld [vmem:[%s212 + $0x14] sm:$0xf]
    %v219 = vld [vmem:[%s212 + $0x18] sm:$0xf]
    %v220 = vld [vmem:[%s212 + $0x1c] sm:$0xf]
    %v221 = vld [vmem:[%s212 + $0x20] sm:$0xf]
    %v222 = vld [vmem:[%s212 + $0x24] sm:$0xf]
    %v223 = vld [vmem:[%s212 + $0x28] sm:$0xf]
    %v224 = vld [vmem:[%s212 + $0x2c] sm:$0xf]
    %v225 = vld [vmem:[%s212 + $0x30] sm:$0xf]
    %v226 = vld [vmem:[%s212 + $0x34] sm:$0xf]
    %v227 = vld [vmem:[%s212 + $0x38] sm:$0xf]
    %v228 = vld [vmem:[%s212 + $0x3c] sm:$0xf]
    %s229 = scalar_lea.vmem [#allocation8], 2
    %v230 = vld [vmem:[%s229] sm:$0x1]
    %v232 = vperm.slane %v230, 0
    %v250 = vunpack.c.l.b16 %v213
    %v251 = vunpack.c.l.b16 %v214
    %v252 = vunpack.c.l.b16 %v215
    %v253 = vunpack.c.l.b16 %v216
    %v254 = vunpack.c.l.b16 %v217
    %v255 = vunpack.c.l.b16 %v218
    %v256 = vunpack.c.l.b16 %v219
    %v257 = vunpack.c.l.b16 %v220
    %v258 = vunpack.c.l.b16 %v221
    %v259 = vunpack.c.l.b16 %v222
    %v260 = vunpack.c.l.b16 %v223
    %v261 = vunpack.c.l.b16 %v224
    %v262 = vunpack.c.l.b16 %v225
    %v263 = vunpack.c.l.b16 %v226
    %v264 = vunpack.c.l.b16 %v227
    %v265 = vunpack.c.l.b16 %v228
    %v266 = vpack.c.b16 %v251, %v250
    %v267 = vpack.c.b16 %v253, %v252
    %v268 = vpack.c.b16 %v255, %v254
    %v269 = vpack.c.b16 %v257, %v256
    %v270 = vpack.c.b16 %v259, %v258
    %v271 = vpack.c.b16 %v261, %v260
    %v272 = vpack.c.b16 %v263, %v262
    %v273 = vpack.c.b16 %v265, %v264
    %282 = vmatpush.bf16.msra.mxu0 %v273
    %283 = vmatpush.bf16.msra.mxu0 %v272
    %284 = vmatpush.bf16.msra.mxu0 %v271
    %285 = vmatpush.bf16.msra.mxu0 %v270
    %286 = vmatpush.bf16.msra.mxu0 %v269
    %287 = vmatpush.bf16.msra.mxu0 %v268
    %288 = vmatpush.bf16.msra.mxu0 %v267
    %289 = vmatpush.bf16.msra.mxu0 %v266
    %290 = vmatmul.bf16.gmra.mxu0 %v211
    %v291 = vpop.f32.mrf.mxu0
    %v292 = vadd.f32 %v232, %v291
    %v293 = vpop.f32.mrf.mxu0
    %v294 = vadd.f32 %v232, %v293
    %295 = vdwg.mxu0
    %v296 = vmax.f32 %v292, 0.0
    %v297 = vmax.f32 %v294, 0.0
    %v298 = vpack.c.bf16 %v297, %v296
    %s299 = scalar_lea.vmem [#allocation7], 128
    %v300 = vld [vmem:[%s299] sm:$0xf]
    %v301 = vld [vmem:[%s299 + $0x4] sm:$0xf]
    %v302 = vld [vmem:[%s299 + $0x8] sm:$0xf]
    %v303 = vld [vmem:[%s299 + $0xc] sm:$0xf]
    %v304 = vld [vmem:[%s299 + $0x10] sm:$0xf]
    %v305 = vld [vmem:[%s299 + $0x14] sm:$0xf]
    %v306 = vld [vmem:[%s299 + $0x18] sm:$0xf]
    %v307 = vld [vmem:[%s299 + $0x1c] sm:$0xf]
    %v308 = vld [vmem:[%s299 + $0x20] sm:$0xf]
    %v309 = vld [vmem:[%s299 + $0x24] sm:$0xf]
    %v310 = vld [vmem:[%s299 + $0x28] sm:$0xf]
    %v311 = vld [vmem:[%s299 + $0x2c] sm:$0xf]
    %v312 = vld [vmem:[%s299 + $0x30] sm:$0xf]
    %v313 = vld [vmem:[%s299 + $0x34] sm:$0xf]
    %v314 = vld [vmem:[%s299 + $0x38] sm:$0xf]
    %v315 = vld [vmem:[%s299 + $0x3c] sm:$0xf]
    %s316 = scalar_lea.vmem [#allocation8], 3
    %v317 = vld [vmem:[%s316] sm:$0x1]
    %v319 = vperm.slane %v317, 0
    %v337 = vunpack.c.l.b16 %v300
    %v338 = vunpack.c.l.b16 %v301
    %v339 = vunpack.c.l.b16 %v302
    %v340 = vunpack.c.l.b16 %v303
    %v341 = vunpack.c.l.b16 %v304
    %v342 = vunpack.c.l.b16 %v305
    %v343 = vunpack.c.l.b16 %v306
    %v344 = vunpack.c.l.b16 %v307
    %v345 = vunpack.c.l.b16 %v308
    %v346 = vunpack.c.l.b16 %v309
    %v347 = vunpack.c.l.b16 %v310
    %v348 = vunpack.c.l.b16 %v311
    %v349 = vunpack.c.l.b16 %v312
    %v350 = vunpack.c.l.b16 %v313
    %v351 = vunpack.c.l.b16 %v314
    %v352 = vunpack.c.l.b16 %v315
    %v353 = vpack.c.b16 %v338, %v337
    %v354 = vpack.c.b16 %v340, %v339
    %v355 = vpack.c.b16 %v342, %v341
    %v356 = vpack.c.b16 %v344, %v343
    %v357 = vpack.c.b16 %v346, %v345
    %v358 = vpack.c.b16 %v348, %v347
    %v359 = vpack.c.b16 %v350, %v349
    %v360 = vpack.c.b16 %v352, %v351
    %369 = vmatpush.bf16.msra.mxu0 %v360
    %370 = vmatpush.bf16.msra.mxu0 %v359
    %371 = vmatpush.bf16.msra.mxu0 %v358
    %372 = vmatpush.bf16.msra.mxu0 %v357
    %373 = vmatpush.bf16.msra.mxu0 %v356
    %374 = vmatpush.bf16.msra.mxu0 %v355
    %375 = vmatpush.bf16.msra.mxu0 %v354
    %376 = vmatpush.bf16.msra.mxu0 %v353
    %377 = vmatmul.bf16.gmra.mxu0 %v298
    %v378 = vpop.f32.mrf.mxu0
    %v379 = vadd.f32 %v319, %v378
    %v380 = vpop.f32.mrf.mxu0
    %v381 = vadd.f32 %v319, %v380
    %382 = vdwg.mxu0
    %383 = vst [vmem:[#allocation10] sm:$0xff] %v379
    %384 = vst [vmem:[#allocation10 + $0x8] sm:$0xff] %v381
    // Predicated region
    $region34: #{tpu_custom_call.1} parent=1 // pred_check
      _
    $region35: #{tpu_custom_call.1} parent=1 // pred_check_branch
      %386 = sbr.rel (0) target = $region37
    $region36: #{tpu_custom_call.1} parent=1 // pred_region
      %388 = vsyncadd [#allocation4], 0
      %s389 = sshll.u32 [#allocation10], 4
      %s390 = int_to_ptr.vmem [resolvable:$true] %s389
      %s391 = sshll.u32 %s4, 4
      %s392 = int_to_ptr.hbm [resolvable:$true] %s391
      %397 = dma.vmem_to_hbm [thread:$0]  %s390, 256, %s392, [#allocation4], 128, 128, 8
    $region37: #{tpu_custom_call.1} parent=1 // pred_fallthru
      _
    // Predicated region
    $region38: #{tpu_custom_call.1} parent=1 // pred_check
      _
    $region39: #{tpu_custom_call.1} parent=1 // pred_check_branch
      %399 = sbr.rel (0) target = $region41
    $region40: #{tpu_custom_call.1} parent=1 // pred_region
      %401 = dma.done [#allocation4], 256
    $region41: #{tpu_custom_call.1} parent=1 // pred_fallthru
      _
    %402 = vsyncpa [#allocation3], 1
    %403 = vsyncpa [#allocation6], 1
    %404 = vsyncpa [#allocation9], 1
    %405 = vsyncpa [#allocation4], 1

</llo_original>
